<compile_context>
chip_gen: v7x
topology: tpu7x:2x2x1
jax: 0.10.0
libtpu: 0.0.40
codegen_flags: <defaults>
</compile_context>

<pallas_src>
import functools

import jax
import jax.numpy as jnp
from jax import lax
from jax.experimental import pallas as pl
from jax.experimental.pallas import tpu as pltpu


def _round_up(a, m):
    return (a + m - 1) // m * m


def _residual_kernel(seed_ref, x_ref, w_ref, b_ref, o_ref, *, p, training):
    x = x_ref[...]                                        # (tm, Hp) input tile
    # Inner module: Linear -> y = x @ W + b  (bf16 MXU inputs, f32 accumulate)
    y = jnp.dot(x.astype(jnp.bfloat16), w_ref[...],
                preferred_element_type=jnp.float32)
    y = y + b_ref[...].astype(jnp.float32)

    if training and p >= 1.0:
        y = jnp.zeros_like(y)                             # everything dropped
    elif training and p > 0.0:
        tm, Hp = y.shape
        # Counter-based hash RNG over the global element index: mask is
        # independent of the tiling and uses only int32 ops (portable).
        row0 = pl.program_id(0) * tm
        rows = lax.broadcasted_iota(jnp.int32, y.shape, 0) + row0
        cols = lax.broadcasted_iota(jnp.int32, y.shape, 1)
        h = rows * Hp + cols
        h = h * (-1640531527) + seed_ref[0]               # golden-ratio mix + seed
        h = h ^ ((h >> 16) & 0xFFFF)                      # murmur3-style finalizer
        h = h * (-2048144789)                             # (logical shifts emulated
        h = h ^ ((h >> 13) & 0x7FFFF)                     #  via arith-shift + mask)
        h = h * (-1028477387)
        h = h ^ ((h >> 16) & 0xFFFF)
        u = (h & 0x7FFFFF).astype(jnp.float32) * (1.0 / (1 << 23))   # U[0, 1)
        keep = u >= jnp.float32(p)                        # keep prob = 1 - p
        y = jnp.where(keep, y * jnp.float32(1.0 / (1.0 - p)), jnp.float32(0.0))

    # Residual add with args[0] (the kernel input tile).
    o_ref[...] = (y + x.astype(jnp.float32)).astype(o_ref.dtype)


def residual_linear(x, w, b, *, p=0.0, training=False, seed=0, tm=256):
    """Fused Residual(Linear) forward.  x:(M,H)  w:(H_in,H_out)=(H,H)  b:(H,)"""
    M, H = x.shape
    assert w.shape == (H, H) and b.shape == (H,)

    # Lane-dense layout: last dim padded to a multiple of 128 so output stores
    # are unmasked; row tile is a multiple of 8 sublanes, rows padded to tile.
    Hp = _round_up(H, 128)
    tm = max(8, (min(int(tm), _round_up(M, 8)) // 8) * 8)
    Mp = _round_up(M, tm)

    xp = x
    if (Mp, Hp) != (M, H):
        xp = jnp.pad(x, ((0, Mp - M), (0, Hp - H)))
    wp = w.astype(jnp.bfloat16)           # bf16 W: MXU-native, halves VMEM/DMA
    if Hp != H:
        wp = jnp.pad(wp, ((0, Hp - H), (0, Hp - H)))
    bp = b.astype(jnp.float32).reshape(1, H)
    if Hp != H:
        bp = jnp.pad(bp, ((0, 0), (0, Hp - H)))

    seed_arr = jnp.array([seed], dtype=jnp.int32)

    # VMEM budget: resident bf16 W + f32 bias + double-buffered x / out tiles.
    # bf16 W keeps an H=4096 layer under v7x's 64 MiB VMEM.
    # TODO(synk): for H where bf16 W alone exceeds ~48 MiB, add a K-tiled
    # accumulator grid axis instead of keeping W fully resident.
    itemsize = jnp.dtype(x.dtype).itemsize
    need = Hp * Hp * 2 + Hp * 4
    need += 2 * tm * Hp * itemsize                  # x tiles (double-buffered)
    need += 2 * tm * Hp * itemsize                  # out tiles (double-buffered)
    vmem_limit = int(min(64 * 1024 * 1024,
                         max(32 * 1024 * 1024, need * 5 // 4 + (1 << 20))))

    kernel = functools.partial(_residual_kernel, p=float(p),
                               training=bool(training))

    out = pl.pallas_call(
        kernel,
        out_shape=jax.ShapeDtypeStruct((Mp, Hp), x.dtype),
        grid_spec=pltpu.PrefetchScalarGridSpec(
            num_scalar_prefetch=1,                            # seed -> SMEM
            grid=(Mp // tm,),
            in_specs=[
                pl.BlockSpec((tm, Hp), lambda i, s: (i, 0)),  # x tile
                pl.BlockSpec((Hp, Hp), lambda i, s: (0, 0)),  # W (resident)
                pl.BlockSpec((1, Hp), lambda i, s: (0, 0)),   # bias
            ],
            out_specs=pl.BlockSpec((tm, Hp), lambda i, s: (i, 0)),
        ),
        compiler_params=pltpu.CompilerParams(
            dimension_semantics=("parallel",),                # M shards across TCs
            vmem_limit_bytes=vmem_limit,
        ),
    )(seed_arr, xp, wp, bp)

    if (Mp, Hp) != (M, H):
        out = out[:M, :H]
    return out


if __name__ == "__main__":
    key = jax.random.PRNGKey(0)
    kx, kw, kb = jax.random.split(key, 3)

    batch, seq, hidden = 2, 8, 32
    x = jax.random.normal(kx, (batch, seq, hidden), dtype=jnp.float32)
    # PyTorch nn.Linear(hidden, hidden): weight (out,in) stored here transposed
    # as (in,out) so y = x @ w + b; bias (out,).
    w = jax.random.normal(kw, (hidden, hidden), dtype=jnp.float32) * 0.05
    b = jax.random.normal(kb, (hidden,), dtype=jnp.float32) * 0.05

    x2d = x.reshape(batch * seq, hidden)

    # Eval-mode forward (dropout = identity) -> deterministic, check vs ref.
    out = jax.block_until_ready(residual_linear(x2d, w, b, p=0.1, training=False))

    ref = (jnp.dot(x2d.astype(jnp.bfloat16), w.astype(jnp.bfloat16),
                   preferred_element_type=jnp.float32) + b + x2d)
    assert out.shape == (batch * seq, hidden)
    assert jnp.allclose(out, ref, atol=2e-2, rtol=2e-2), "mismatch vs reference"

    # Train-mode forward (hash-based dropout) exercises that path.
    out_train = jax.block_until_ready(
        residual_linear(x2d, w, b, p=0.1, training=True, seed=123))
    assert out_train.shape == out.shape
    assert bool(jnp.all(jnp.isfinite(out_train)))

    print("KERNEL_OK")
</pallas_src>

<mosaic_0001>
module attributes {stable_mosaic.version = 11 : i64} {
  func.func @_residual_kernel(%arg0: i32, %arg1: memref<1xi32, #tpu.memory_space<smem>>, %arg2: memref<16x128xf32, #tpu.memory_space<vmem>>, %arg3: memref<128x128xbf16, #tpu.memory_space<vmem>>, %arg4: memref<1x128xf32, #tpu.memory_space<vmem>>, %arg5: memref<16x128xf32, #tpu.memory_space<vmem>>) attributes {dimension_semantics = [#tpu.dimension_semantics<parallel>], iteration_bounds = array<i64: 1>, scalar_prefetch = 1 : i64, scratch_operands = 0 : i64, tpu.core_type = #tpu.core_type<tc>, window_params = [{transform_indices = @transform_0, window_bounds = array<i64: 16, 128>}, {pipeline_mode = #tpu.pipeline_mode<synchronous>, transform_indices = @transform_1, window_bounds = array<i64: 128, 128>}, {pipeline_mode = #tpu.pipeline_mode<synchronous>, transform_indices = @transform_2, window_bounds = array<i64: 1, 128>}, {transform_indices = @transform_3, window_bounds = array<i64: 16, 128>}]} {
    %c0 = arith.constant 0 : index
    %c0_0 = arith.constant 0 : index
    %0 = vector.load %arg2[%c0, %c0_0] : memref<16x128xf32, #tpu.memory_space<vmem>>, vector<16x128xf32>
    %1 = arith.truncf %0 : vector<16x128xf32> to vector<16x128xbf16>
    %c0_1 = arith.constant 0 : index
    %c0_2 = arith.constant 0 : index
    %2 = vector.load %arg3[%c0_1, %c0_2] : memref<128x128xbf16, #tpu.memory_space<vmem>>, vector<128x128xbf16>
    %cst = arith.constant dense<0.000000e+00> : vector<16x128xf32>
    %3 = tpu.matmul %1, %2, %cst {dimension_numbers = #tpu.dot_dimension_numbers<[1], [0], [0], [1], [0, 0, 1, 1], [], []>} : vector<16x128xbf16>, vector<128x128xbf16>, vector<16x128xf32> -> vector<16x128xf32>
    %c0_3 = arith.constant 0 : index
    %c0_4 = arith.constant 0 : index
    %4 = vector.load %arg4[%c0_3, %c0_4] : memref<1x128xf32, #tpu.memory_space<vmem>>, vector<1x128xf32>
    %5 = vector.broadcast %4 : vector<1x128xf32> to vector<16x128xf32>
    %6 = arith.addf %3, %5 : vector<16x128xf32>
    %7 = arith.addf %6, %0 : vector<16x128xf32>
    %c0_5 = arith.constant 0 : index
    %c0_6 = arith.constant 0 : index
    %8 = vector.load %arg5[%c0_5, %c0_6] : memref<16x128xf32, #tpu.memory_space<vmem>>, vector<16x128xf32>
    tpu.vector_store %arg5[%c0_5, %c0_6], %7 {strides = array<i32>} : memref<16x128xf32, #tpu.memory_space<vmem>>, vector<16x128xf32>,
    return
  }
  func.func @transform_0(%arg0: i32, %arg1: memref<1xi32, #tpu.memory_space<smem>>) -> (i32, i32) {
    %c0_i32 = arith.constant 0 : i32
    %c0_i32_0 = arith.constant 0 : i32
    return %arg0, %c0_i32 : i32, i32
  }
  func.func @transform_1(%arg0: i32, %arg1: memref<1xi32, #tpu.memory_space<smem>>) -> (i32, i32) {
    %c0_i32 = arith.constant 0 : i32
    %c0_i32_0 = arith.constant 0 : i32
    %c0_i32_1 = arith.constant 0 : i32
    return %c0_i32, %c0_i32_0 : i32, i32
  }
  func.func @transform_2(%arg0: i32, %arg1: memref<1xi32, #tpu.memory_space<smem>>) -> (i32, i32) {
    %c0_i32 = arith.constant 0 : i32
    %c0_i32_0 = arith.constant 0 : i32
    %c0_i32_1 = arith.constant 0 : i32
    return %c0_i32, %c0_i32_0 : i32, i32
  }
  func.func @transform_3(%arg0: i32, %arg1: memref<1xi32, #tpu.memory_space<smem>>) -> (i32, i32) {
    %c0_i32 = arith.constant 0 : i32
    %c0_i32_0 = arith.constant 0 : i32
    return %arg0, %c0_i32 : i32, i32
  }
}

</mosaic_0001>

<llo_original>
// kernel: tpu_custom_call.1
$region0: #{tpu_custom_call.1}
  #allocation0 [shape = 'u32[]', space=smem, size = 0x4, offset = 0x4, fixed_abs, tag = 'smem constant byte address 0x4 - core index']
  #allocation1 [shape = 'u32[144,128]{1,0:T(1,128)}', space=vmem, size = 0x12000, scoped, tag = 'internal scratch']
  #allocation2 [shape = 's32[1]{0}', space=sflag, size = 0x4, scoped, tag = 'scoped memory for tpu_custom_call.1']
  #allocation3 [shape = 's32[1]{0:T(128)S(6)}', space=smem, size = 0x200, scoped, tag = 'prefetched SMEM operand 0']
  %s0 = inlined_call_operand.<no memory space> [shape: s32[1], index: 0, kind: input, shape index: {}]
  %s1 = inlined_call_operand.hbm [shape: f32[16,128], index: 1, kind: input, shape index: {}]
  %s2 = inlined_call_operand.hbm [shape: bf16[128,128], index: 2, kind: input, shape index: {}]
  %s3 = inlined_call_operand.vmem [shape: f32[1,128], index: 3, kind: input, shape index: {}]
  %s4 = inlined_call_operand.hbm [shape: f32[16,128], index: 4, kind: output, shape index: {}]
  %s5 = sld [smem:[#allocation0]]
  $region30: #{tpu_custom_call.1} parent=0
    _
  %s7 = ssub.s32 1, %s5
  %s8 = scalar_select 0, %s7, %s5
  %9 = sst [smem:[#allocation3]] %s0
  $region1: #{tpu_custom_call.1} parent=0
    #allocation4 [shape = 'u8[8192]{0}', space=vmem, size = 0x2000, scoped, tag = 'input window, operand 1, single buffered']
    #allocation5 [shape = 's32[1]{0}', space=sflag, size = 0x4, scoped, tag = 'scoped memory for tpu_custom_call.1']
    #allocation6 [shape = 's32[1]{0}', space=sflag, size = 0x4, scoped, tag = 'scoped memory for tpu_custom_call.1']
    #allocation7 [shape = 'u8[32768]{0}', space=vmem, size = 0x8000, scoped, tag = 'input window, operand 2, single buffered']
    #allocation8 [shape = 's32[1]{0}', space=sflag, size = 0x4, scoped, tag = 'scoped memory for tpu_custom_call.1']
    #allocation9 [shape = 'u8[8192]{0}', space=vmem, size = 0x2000, scoped, tag = 'output window, operand 0, single buffered']
    %10 = vsyncpa [#allocation5], 0
    %11 = vsyncpa [#allocation8], 0
    %12 = vsyncpa [#allocation6], 0
    // Predicated region
    $region2: #{tpu_custom_call.1} parent=1 // pred_check
      _
    $region3: #{tpu_custom_call.1} parent=1 // pred_check_branch
      %14 = sbr.rel (0) target = $region5
    $region4: #{tpu_custom_call.1} parent=1 // pred_region
      %s16 = ssub.s32 256, 256
      %17 = vsyncadd [#allocation5], %s16
      %s18 = sshll.u32 [#allocation4], 4
      %s19 = int_to_ptr.vmem [resolvable:$true] %s18
      %24 = dma.hbm_to_vmem [thread:$0]  %s1, 256, %s19, [#allocation5], 128, 128, 8
    $region5: #{tpu_custom_call.1} parent=1 // pred_fallthru
      _
    // Predicated region
    $region6: #{tpu_custom_call.1} parent=1 // pred_check
      _
    $region7: #{tpu_custom_call.1} parent=1 // pred_check_branch
      %26 = sbr.rel (0) target = $region9
    $region8: #{tpu_custom_call.1} parent=1 // pred_region
      %s28 = ssub.s32 1024, 1024
      %29 = vsyncadd [#allocation8], %s28
      %s30 = sshll.u32 [#allocation7], 4
      %s31 = int_to_ptr.vmem [resolvable:$true] %s30
      %36 = dma.hbm_to_vmem [thread:$0]  %s2, 1024, %s31, [#allocation8], 64, 64, 4
    $region9: #{tpu_custom_call.1} parent=1 // pred_fallthru
      _
    // Predicated region
    $region10: #{tpu_custom_call.1} parent=1 // pred_check
      _
    $region11: #{tpu_custom_call.1} parent=1 // pred_check_branch
      %38 = sbr.rel (0) target = $region13
    $region12: #{tpu_custom_call.1} parent=1 // pred_region
      _
    $region13: #{tpu_custom_call.1} parent=1 // pred_fallthru
      _
    // Predicated region
    $region14: #{tpu_custom_call.1} parent=1 // pred_check
      _
    $region15: #{tpu_custom_call.1} parent=1 // pred_check_branch
      %40 = sbr.rel (0) target = $region17
    $region16: #{tpu_custom_call.1} parent=1 // pred_region
      %41 = dma.done [#allocation5], 256
    $region17: #{tpu_custom_call.1} parent=1 // pred_fallthru
      _
    // Predicated region
    $region18: #{tpu_custom_call.1} parent=1 // pred_check
      _
    $region19: #{tpu_custom_call.1} parent=1 // pred_check_branch
      %43 = sbr.rel (0) target = $region21
    $region20: #{tpu_custom_call.1} parent=1 // pred_region
      %44 = dma.done [#allocation8], 1024
    $region21: #{tpu_custom_call.1} parent=1 // pred_fallthru
      _
    %v46 = vld [vmem:[#allocation4] sm:$0xff]
    %v47 = vld [vmem:[#allocation4 + $0x8] sm:$0xff]
    %v48 = vpack.c.bf16 %v47, %v46
    %v49 = vld [vmem:[#allocation7] sm:$0xf]
    %v50 = vld [vmem:[#allocation7 + $0x4] sm:$0xf]
    %v51 = vld [vmem:[#allocation7 + $0x8] sm:$0xf]
    %v52 = vld [vmem:[#allocation7 + $0xc] sm:$0xf]
    %v53 = vld [vmem:[#allocation7 + $0x10] sm:$0xf]
    %v54 = vld [vmem:[#allocation7 + $0x14] sm:$0xf]
    %v55 = vld [vmem:[#allocation7 + $0x18] sm:$0xf]
    %v56 = vld [vmem:[#allocation7 + $0x1c] sm:$0xf]
    %v57 = vld [vmem:[#allocation7 + $0x20] sm:$0xf]
    %v58 = vld [vmem:[#allocation7 + $0x24] sm:$0xf]
    %v59 = vld [vmem:[#allocation7 + $0x28] sm:$0xf]
    %v60 = vld [vmem:[#allocation7 + $0x2c] sm:$0xf]
    %v61 = vld [vmem:[#allocation7 + $0x30] sm:$0xf]
    %v62 = vld [vmem:[#allocation7 + $0x34] sm:$0xf]
    %v63 = vld [vmem:[#allocation7 + $0x38] sm:$0xf]
    %v64 = vld [vmem:[#allocation7 + $0x3c] sm:$0xf]
    %v65 = vld [vmem:[%s3] sm:$0x1]
    %v67 = vlaneseq
    %v68 = vshrl.u32 %v67, 7
    %v69 = vsub.s32 0, %v68
    %v70 = vrot.slane %v65, %v69
    %v88 = vunpack.c.l.b16 %v49
    %v89 = vunpack.c.l.b16 %v50
    %v90 = vunpack.c.l.b16 %v51
    %v91 = vunpack.c.l.b16 %v52
    %v92 = vunpack.c.l.b16 %v53
    %v93 = vunpack.c.l.b16 %v54
    %v94 = vunpack.c.l.b16 %v55
    %v95 = vunpack.c.l.b16 %v56
    %v96 = vunpack.c.l.b16 %v57
    %v97 = vunpack.c.l.b16 %v58
    %v98 = vunpack.c.l.b16 %v59
    %v99 = vunpack.c.l.b16 %v60
    %v100 = vunpack.c.l.b16 %v61
    %v101 = vunpack.c.l.b16 %v62
    %v102 = vunpack.c.l.b16 %v63
    %v103 = vunpack.c.l.b16 %v64
    %v104 = vpack.c.b16 %v89, %v88
    %v105 = vpack.c.b16 %v91, %v90
    %v106 = vpack.c.b16 %v93, %v92
    %v107 = vpack.c.b16 %v95, %v94
    %v108 = vpack.c.b16 %v97, %v96
    %v109 = vpack.c.b16 %v99, %v98
    %v110 = vpack.c.b16 %v101, %v100
    %v111 = vpack.c.b16 %v103, %v102
    %120 = vmatprep.subr.bf16.mxu0 0
    %121 = vmatpush1.bf16.msra.mxu0 %v104
    %122 = vmatprep.subr.bf16.mxu0 0
    %123 = vmatpush1.bf16.msra.mxu0 %v105
    %124 = vmatprep.subr.bf16.mxu0 0
    %125 = vmatpush1.bf16.msra.mxu0 %v106
    %126 = vmatprep.subr.bf16.mxu0 0
    %127 = vmatpush1.bf16.msra.mxu0 %v107
    %128 = vmatprep.subr.bf16.mxu0 0
    %129 = vmatpush1.bf16.msra.mxu0 %v108
    %130 = vmatprep.subr.bf16.mxu0 0
    %131 = vmatpush1.bf16.msra.mxu0 %v109
    %132 = vmatprep.subr.bf16.mxu0 0
    %133 = vmatpush1.bf16.msra.mxu0 %v110
    %134 = vmatprep.subr.bf16.mxu0 0
    %135 = vmatpush1.bf16.msra.mxu0 %v111
    %136 = vmatprep.subr.bf16.mxu0 0
    %137 = vmatpush1.bf16.msra.mxu0 0
    %138 = vmatprep.subr.bf16.mxu0 0
    %139 = vmatpush1.bf16.msra.mxu0 0
    %140 = vmatprep.subr.bf16.mxu0 0
    %141 = vmatpush1.bf16.msra.mxu0 0
    %142 = vmatprep.subr.bf16.mxu0 0
    %143 = vmatpush1.bf16.msra.mxu0 0
    %144 = vmatprep.subr.bf16.mxu0 0
    %145 = vmatpush1.bf16.msra.mxu0 0
    %146 = vmatprep.subr.bf16.mxu0 0
    %147 = vmatpush1.bf16.msra.mxu0 0
    %148 = vmatprep.subr.bf16.mxu0 0
    %149 = vmatpush1.bf16.msra.mxu0 0
    %150 = vmatprep.subr.bf16.mxu0 0
    %151 = vmatpush1.bf16.msra.mxu0 0
    %152 = vmatprep.mubr.bf16.mxu0 0
    %153 = vmatmul.mubr.bf16.gmra.mrb[0].mxu0 %v48
    %v154 = vpop.f32.mrb[0].mxu0
    %v155 = vadd.f32 %v70, %v154
    %v156 = vpop.f32.mrb[0].mxu0
    %v157 = vpop.f32.mrb[0].mxu0
    %v158 = vadd.f32 %v70, %v157
    %v159 = vpop.f32.mrb[0].mxu0
    %160 = vdwg.mxu0
    %v161 = vadd.f32 %v155, %v46
    %v162 = vadd.f32 %v158, %v47
    %163 = vst [vmem:[#allocation9] sm:$0xff] %v161
    %164 = vst [vmem:[#allocation9 + $0x8] sm:$0xff] %v162
    // Predicated region
    $region22: #{tpu_custom_call.1} parent=1 // pred_check
      _
    $region23: #{tpu_custom_call.1} parent=1 // pred_check_branch
      %166 = sbr.rel (0) target = $region25
    $region24: #{tpu_custom_call.1} parent=1 // pred_region
      %s168 = ssub.s32 256, 256
      %169 = vsyncadd [#allocation6], %s168
      %s170 = sshll.u32 [#allocation9], 4
      %s171 = int_to_ptr.vmem [resolvable:$true] %s170
      %176 = dma.vmem_to_hbm [thread:$0]  %s171, 256, %s4, [#allocation6], 128, 128, 8
    $region25: #{tpu_custom_call.1} parent=1 // pred_fallthru
      _
    // Predicated region
    $region26: #{tpu_custom_call.1} parent=1 // pred_check
      _
    $region27: #{tpu_custom_call.1} parent=1 // pred_check_branch
      %178 = sbr.rel (0) target = $region29
    $region28: #{tpu_custom_call.1} parent=1 // pred_region
      %179 = dma.done [#allocation6], 256
    $region29: #{tpu_custom_call.1} parent=1 // pred_fallthru
      _
    %180 = vsyncpa [#allocation5], 1
    %181 = vsyncpa [#allocation8], 1
    %182 = vsyncpa [#allocation6], 1

</llo_original>
